<compile_context>
chip_gen: v7x
topology: tpu7x:2x2x1
jax: 0.10.0
libtpu: 0.0.40
codegen_flags: <defaults>
</compile_context>

<pallas_src>
import jax
import jax.numpy as jnp
from jax import lax
from jax.experimental import pallas as pl
from jax.experimental.pallas import tpu as pltpu


def hybrid_block_kernel(x_ref, w1s_ref, w2s_ref, resb_ref, sh1_ref, sh2_ref, shr_ref, o_ref):
    # x_ref   : (B_TILE, H, W*Cin)        input slab (pixel-major, channel-minor), f32
    # w1s_ref : (3*W*Cin,  W*Cout)        conv1 banded weights, 3 vertical taps stacked along K
    # w2s_ref : (3*W*Cout, W*Cout)        conv2 banded weights, 3 vertical taps stacked along K
    # resb_ref: (W*Cin, W*Cout)           residual 1x1 conv as block-diagonal matrix
    # sh1_ref : (1, W*Cout)  BN1 shift (incl. conv1 bias) tiled over W
    # sh2_ref : (1, W*Cout)  BN2 shift (incl. conv2 bias) tiled over W
    # shr_ref : (1, W*Cout)  residual bias tiled over W
    # o_ref   : (B_TILE, H, W*Cout)       lane-dense output slab, f32
    B, H, WCin = x_ref.shape
    WCout = o_ref.shape[2]
    M = B * H
    mm_dtype = w1s_ref.dtype                      # bf16 on v6e/v7x fast path, f32 otherwise

    x = x_ref[...].reshape(M, WCin)               # merge batch rows into the matmul M dimension

    # Vertical-halo masks, computed once and reused for conv1 and conv2.
    # row % H keeps the roll-based halo correct across stacked images in the slab.
    row = lax.broadcasted_iota(jnp.int32, (M, 1), 0) % H
    valid_up = row >= 1                           # row above exists inside the same image
    valid_dn = row < (H - 1)                      # row below exists inside the same image

    def taps(v):
        # [shift(-1) || centre || shift(+1)] along lanes: one K-stacked matmul per conv.
        n = v.shape[0]
        up = jnp.where(valid_up, pltpu.roll(v, 1, 0), jnp.zeros_like(v))       # out[i] = v[i-1]
        dn = jnp.where(valid_dn, pltpu.roll(v, n - 1, 0), jnp.zeros_like(v))    # out[i] = v[i+1]
        return jnp.concatenate([up, v, dn], axis=1)

    # conv1 (all 3 vertical taps in one K=3*W*Cin matmul) + folded BN1 shift, ReLU.
    acc1 = jnp.dot(taps(x).astype(mm_dtype), w1s_ref[...],
                   preferred_element_type=jnp.float32) + sh1_ref[...]
    out1 = jnp.maximum(acc1, 0.0)                 # ReLU; dropout = identity (eval mode)

    # conv2 (one K=3*W*Cout matmul) + folded BN2 shift.
    acc2 = jnp.dot(taps(out1).astype(mm_dtype), w2s_ref[...],
                   preferred_element_type=jnp.float32) + sh2_ref[...]

    # Residual 1x1 conv computed AFTER conv2 so it is not live across conv2's matmul.
    res = jnp.dot(x.astype(mm_dtype), resb_ref[...],
                  preferred_element_type=jnp.float32) + shr_ref[...]

    o_ref[...] = jnp.maximum(acc2 + res, 0.0).reshape(B, H, WCout).astype(o_ref.dtype)


def _banded(w_taps, c_in, c_out, W):
    """w_taps: (3, 3, c_in, c_out) conv kernel (kh, kw, ci, co).

    Returns (3, W*c_in, W*c_out): for each vertical tap kh a banded matrix B with
    B[(j+kw-1)*c_in + ci, j*c_out + co] = w_taps[kh, kw, ci, co] and zeros outside the image,
    so horizontal taps and horizontal zero-padding are absorbed into a single matmul.
    """
    mats = []
    for kh in range(3):
        t = jnp.zeros((W, c_in, W, c_out), w_taps.dtype)
        for kw in range(3):
            sel = jnp.eye(W, k=1 - kw, dtype=w_taps.dtype)    # sel[j+kw-1, j] = 1 (inside image)
            t = t + sel[:, None, :, None] * w_taps[kh, kw][None, :, None, :]
        mats.append(t.reshape(W * c_in, W * c_out))
    return jnp.stack(mats)


def hybrid_conv_res_block(x_nchw, p, *, matmul_dtype=jnp.float32, b_tile=None):
    """x_nchw: (N, Cin, H, W) float32 (PyTorch layout).  Returns (N, Cout, H, W) float32.

    matmul_dtype=jnp.bfloat16 casts only the MXU operands (weights + im2row slabs); all
    elementwise math, shifts and the store stay f32.
    """
    N, Cin, H, W = x_nchw.shape
    Cout = p["w1"].shape[-1]
    eps = 1e-5
    f32 = jnp.float32

    # Pick a batch tile: fatten M = b_tile*H towards ~128 MXU rows, but keep the parallel grid
    # length >= 2 so both v7x TensorCores get work (for the tiny N=2 demo this gives b_tile=1).
    if b_tile is None:
        b_tile = max(1, min(N // 2 if N >= 2 else N, max(1, 128 // H)))
    while N % b_tile:
        b_tile -= 1

    # Fold BatchNorm (inference mode) into the conv weights; keep only per-channel shifts.
    scale1 = p["gamma1"] / jnp.sqrt(p["var1"] + eps)
    shift1 = p["beta1"] + (p["b1"] - p["mean1"]) * scale1
    scale2 = p["gamma2"] / jnp.sqrt(p["var2"] + eps)
    shift2 = p["beta2"] + (p["b2"] - p["mean2"]) * scale2

    # Banded conv weights (horizontal taps + horizontal zero-padding baked in), then the 3
    # vertical taps stacked along K so each conv is a single matmul in the kernel.
    w1b = _banded(p["w1"] * scale1, Cin, Cout, W)          # (3, W*Cin,  W*Cout)
    w2b = _banded(p["w2"] * scale2, Cout, Cout, W)         # (3, W*Cout, W*Cout)
    w1s = w1b.reshape(3 * W * Cin, W * Cout).astype(matmul_dtype)
    w2s = w2b.reshape(3 * W * Cout, W * Cout).astype(matmul_dtype)

    # Residual 1x1 conv as a block-diagonal matrix (its own small matmul; no zero-column bloat).
    resb = (jnp.eye(W, dtype=f32)[:, None, :, None] * p["wr"][None, :, None, :]
            ).reshape(W * Cin, W * Cout).astype(matmul_dtype)

    sh1 = jnp.tile(shift1, W).reshape(1, W * Cout).astype(f32)
    sh2 = jnp.tile(shift2, W).reshape(1, W * Cout).astype(f32)
    shr = jnp.tile(p["br"], W).reshape(1, W * Cout).astype(f32)

    # NCHW -> lane-dense (N, H, W*Cin) slab (channel-minor). W*Cout = 128 here -> unmasked stores.
    x_slab = jnp.transpose(x_nchw, (0, 2, 3, 1)).reshape(N, H, W * Cin).astype(f32)

    m_total = N * H
    flops = 2 * m_total * ((3 * W * Cin) * (W * Cout)
                           + (3 * W * Cout) * (W * Cout)
                           + (W * Cin) * (W * Cout))
    bytes_accessed = (x_slab.size * x_slab.dtype.itemsize
                      + m_total * W * Cout * 4
                      + w1s.size * w1s.dtype.itemsize
                      + w2s.size * w2s.dtype.itemsize
                      + resb.size * resb.dtype.itemsize
                      + 3 * W * Cout * 4)

    out_slab = pl.pallas_call(
        hybrid_block_kernel,
        out_shape=jax.ShapeDtypeStruct((N, H, W * Cout), f32),
        grid_spec=pltpu.PrefetchScalarGridSpec(
            num_scalar_prefetch=0,
            grid=(N // b_tile,),
            in_specs=[
                pl.BlockSpec((b_tile, H, W * Cin), lambda n: (n, 0, 0)),
                pl.BlockSpec((3 * W * Cin, W * Cout), lambda n: (0, 0)),
                pl.BlockSpec((3 * W * Cout, W * Cout), lambda n: (0, 0)),
                pl.BlockSpec((W * Cin, W * Cout), lambda n: (0, 0)),
                pl.BlockSpec((1, W * Cout), lambda n: (0, 0)),
                pl.BlockSpec((1, W * Cout), lambda n: (0, 0)),
                pl.BlockSpec((1, W * Cout), lambda n: (0, 0)),
            ],
            out_specs=pl.BlockSpec((b_tile, H, W * Cout), lambda n: (n, 0, 0)),
        ),
        compiler_params=pltpu.CompilerParams(
            dimension_semantics=("parallel",),      # batch tiles independent -> both v7x TCs
            vmem_limit_bytes=32 * 1024 * 1024,      # explicit budget, safe within v7x's 64 MiB
        ),
        cost_estimate=pl.CostEstimate(
            flops=flops, transcendentals=0, bytes_accessed=bytes_accessed),
    )(x_slab, w1s, w2s, resb, sh1, sh2, shr)

    out_nhwc = out_slab.reshape(N, H, W, Cout)
    return jnp.transpose(out_nhwc, (0, 3, 1, 2))


def reference_forward(x_nchw, p):
    """Plain-JAX reference (inference-mode BN, identity dropout)."""
    eps = 1e-5
    dn = ("NHWC", "HWIO", "NHWC")
    x = jnp.transpose(x_nchw, (0, 2, 3, 1))

    def bn(v, gamma, beta, mean, var):
        return (v - mean) / jnp.sqrt(var + eps) * gamma + beta

    c1 = lax.conv_general_dilated(x, p["w1"], (1, 1), "SAME", dimension_numbers=dn) + p["b1"]
    out = jax.nn.relu(bn(c1, p["gamma1"], p["beta1"], p["mean1"], p["var1"]))
    c2 = lax.conv_general_dilated(out, p["w2"], (1, 1), "SAME", dimension_numbers=dn) + p["b2"]
    out = bn(c2, p["gamma2"], p["beta2"], p["mean2"], p["var2"])
    res = lax.conv_general_dilated(x, p["wr"][None, None], (1, 1), "SAME",
                                   dimension_numbers=dn) + p["br"]
    out = jax.nn.relu(out + res)
    return jnp.transpose(out, (0, 3, 1, 2))


def make_params(key, cin, cout):
    ks = jax.random.split(key, 12)
    return {
        "w1": 0.1 * jax.random.normal(ks[0], (3, 3, cin, cout), jnp.float32),
        "b1": 0.1 * jax.random.normal(ks[1], (cout,), jnp.float32),
        "w2": 0.1 * jax.random.normal(ks[2], (3, 3, cout, cout), jnp.float32),
        "b2": 0.1 * jax.random.normal(ks[3], (cout,), jnp.float32),
        "wr": 0.1 * jax.random.normal(ks[4], (cin, cout), jnp.float32),
        "br": 0.1 * jax.random.normal(ks[5], (cout,), jnp.float32),
        "gamma1": 1.0 + 0.1 * jax.random.normal(ks[6], (cout,), jnp.float32),
        "beta1": 0.1 * jax.random.normal(ks[7], (cout,), jnp.float32),
        "mean1": 0.1 * jax.random.normal(ks[8], (cout,), jnp.float32),
        "var1": 1.0 + 0.1 * jnp.abs(jax.random.normal(ks[9], (cout,), jnp.float32)),
        "gamma2": 1.0 + 0.1 * jax.random.normal(ks[10], (cout,), jnp.float32),
        "beta2": 0.1 * jax.random.normal(ks[11], (cout,), jnp.float32),
        "mean2": 0.1 * jax.random.normal(ks[6], (cout,), jnp.float32) * 0.5,
        "var2": 1.0 + 0.1 * jnp.abs(jax.random.normal(ks[7], (cout,), jnp.float32)),
    }


if __name__ == "__main__":
    key = jax.random.PRNGKey(0)
    kx, kp = jax.random.split(key)

    N, Cin, H, W, Cout = 2, 4, 16, 16, 8
    x = jax.random.normal(kx, (N, Cin, H, W), jnp.float32)     # NCHW, matching the torch module
    params = make_params(kp, Cin, Cout)

    ref = reference_forward(x, params)

    # f32 MXU-operand path (exact enough for 1e-4 vs the f32 reference).
    out = jax.block_until_ready(hybrid_conv_res_block(x, params))
    assert out.shape == (N, Cout, H, W)
    assert jnp.allclose(out, ref, atol=1e-4, rtol=1e-4), "f32 kernel mismatch vs reference"

    # bf16 MXU-operand path (v6e/v7x fast path): f32 accumulation, looser tolerance.
    out_bf16 = jax.block_until_ready(
        hybrid_conv_res_block(x, params, matmul_dtype=jnp.bfloat16))
    assert jnp.allclose(out_bf16, ref, atol=5e-2, rtol=5e-2), "bf16 kernel mismatch vs reference"

    print("KERNEL_OK")
</pallas_src>

<mosaic_0001>
module attributes {stable_mosaic.version = 11 : i64} {
  func.func @hybrid_block_kernel(%arg0: i32, %arg1: memref<1x16x64xf32, #tpu.memory_space<vmem>>, %arg2: memref<192x128xf32, #tpu.memory_space<vmem>>, %arg3: memref<384x128xf32, #tpu.memory_space<vmem>>, %arg4: memref<64x128xf32, #tpu.memory_space<vmem>>, %arg5: memref<1x128xf32, #tpu.memory_space<vmem>>, %arg6: memref<1x128xf32, #tpu.memory_space<vmem>>, %arg7: memref<1x128xf32, #tpu.memory_space<vmem>>, %arg8: memref<1x16x128xf32, #tpu.memory_space<vmem>>) attributes {dimension_semantics = [#tpu.dimension_semantics<parallel>], iteration_bounds = array<i64: 2>, scalar_prefetch = 0 : i64, scratch_operands = 0 : i64, tpu.core_type = #tpu.core_type<tc>, window_params = [{transform_indices = @transform_0, window_bounds = array<i64: 1, 16, 64>}, {pipeline_mode = #tpu.pipeline_mode<synchronous>, transform_indices = @transform_1, window_bounds = array<i64: 192, 128>}, {pipeline_mode = #tpu.pipeline_mode<synchronous>, transform_indices = @transform_2, window_bounds = array<i64: 384, 128>}, {pipeline_mode = #tpu.pipeline_mode<synchronous>, transform_indices = @transform_3, window_bounds = array<i64: 64, 128>}, {pipeline_mode = #tpu.pipeline_mode<synchronous>, transform_indices = @transform_4, window_bounds = array<i64: 1, 128>}, {pipeline_mode = #tpu.pipeline_mode<synchronous>, transform_indices = @transform_5, window_bounds = array<i64: 1, 128>}, {pipeline_mode = #tpu.pipeline_mode<synchronous>, transform_indices = @transform_6, window_bounds = array<i64: 1, 128>}, {transform_indices = @transform_7, window_bounds = array<i64: 1, 16, 128>}]} {
    %c0 = arith.constant 0 : index
    %c0_0 = arith.constant 0 : index
    %c0_1 = arith.constant 0 : index
    %0 = vector.load %arg1[%c0, %c0_0, %c0_1] : memref<1x16x64xf32, #tpu.memory_space<vmem>>, vector<1x16x64xf32>
    %1 = vector.shape_cast %0 : vector<1x16x64xf32> to vector<16x64xf32>
    %2 = tpu.iota {dimensions = array<i32: 0>} : vector<16x1xi32>
    %c16_i32 = arith.constant 16 : i32
    %c0_i32 = arith.constant 0 : i32
    %3 = arith.cmpi eq, %c16_i32, %c0_i32 : i32
    %c1_i32 = arith.constant 1 : i32
    %4 = arith.select %3, %c1_i32, %c16_i32 : i32
    %5 = vector.broadcast %4 : i32 to vector<16x1xi32>
    %6 = arith.remsi %2, %5 : vector<16x1xi32>
    %c0_i32_2 = arith.constant 0 : i32
    %7 = vector.broadcast %c0_i32_2 : i32 to vector<16x1xi32>
    %8 = arith.cmpi ne, %6, %7 : vector<16x1xi32>
    %c0_i32_3 = arith.constant 0 : i32
    %9 = vector.broadcast %c0_i32_3 : i32 to vector<16x1xi32>
    %10 = arith.cmpi slt, %6, %9 : vector<16x1xi32>
    %c0_i32_4 = arith.constant 0 : i32
    %11 = arith.cmpi slt, %4, %c0_i32_4 : i32
    %12 = vector.broadcast %11 : i1 to vector<16x1xi1>
    %13 = vector.broadcast %12 : vector<16x1xi1> to vector<16x1xi1>
    %14 = arith.xori %10, %13 : vector<16x1xi1>
    %15 = arith.andi %14, %8 : vector<16x1xi1>
    %16 = vector.broadcast %4 : i32 to vector<16x1xi32>
    %17 = arith.addi %6, %16 : vector<16x1xi32>
    %18 = arith.select %15, %17, %6 : vector<16x1xi1>, vector<16x1xi32>
    %c1_i32_5 = arith.constant 1 : i32
    %19 = vector.broadcast %c1_i32_5 : i32 to vector<16x1xi32>
    %20 = arith.cmpi sge, %18, %19 : vector<16x1xi32>
    %c15_i32 = arith.constant 15 : i32
    %21 = vector.broadcast %c15_i32 : i32 to vector<16x1xi32>
    %22 = arith.cmpi slt, %18, %21 : vector<16x1xi32>
    %c1_i32_6 = arith.constant 1 : i32
    %23 = tpu.dynamic_rotate %1 by %c1_i32_6 dim 0 : vector<16x64xf32>, i32 -> vector<16x64xf32>
    %cst = arith.constant 0.000000e+00 : f32
    %24 = vector.broadcast %cst : f32 to vector<16x64xf32>
    %25 = vector.shape_cast %20 : vector<16x1xi1> to vector<16x1xi1>
    %26 = vector.broadcast %25 : vector<16x1xi1> to vector<16x64xi1>
    %27 = arith.select %26, %23, %24 : vector<16x64xi1>, vector<16x64xf32>
    %c15_i32_7 = arith.constant 15 : i32
    %28 = tpu.dynamic_rotate %1 by %c15_i32_7 dim 0 : vector<16x64xf32>, i32 -> vector<16x64xf32>
    %cst_8 = arith.constant 0.000000e+00 : f32
    %29 = vector.broadcast %cst_8 : f32 to vector<16x64xf32>
    %30 = vector.shape_cast %22 : vector<16x1xi1> to vector<16x1xi1>
    %31 = vector.broadcast %30 : vector<16x1xi1> to vector<16x64xi1>
    %32 = arith.select %31, %28, %29 : vector<16x64xi1>, vector<16x64xf32>
    %33 = tpu.concatenate %27, %1, %32 in 1 : vector<16x64xf32>, vector<16x64xf32>, vector<16x64xf32> -> vector<16x192xf32>
    %c0_9 = arith.constant 0 : index
    %c0_10 = arith.constant 0 : index
    %34 = vector.load %arg2[%c0_9, %c0_10] : memref<192x128xf32, #tpu.memory_space<vmem>>, vector<192x128xf32>
    %cst_11 = arith.constant dense<0.000000e+00> : vector<16x128xf32>
    %35 = tpu.matmul %33, %34, %cst_11 {dimension_numbers = #tpu.dot_dimension_numbers<[1], [0], [0], [1], [0, 0, 1, 1], [], []>} : vector<16x192xf32>, vector<192x128xf32>, vector<16x128xf32> -> vector<16x128xf32>
    %c0_12 = arith.constant 0 : index
    %c0_13 = arith.constant 0 : index
    %36 = vector.load %arg5[%c0_12, %c0_13] : memref<1x128xf32, #tpu.memory_space<vmem>>, vector<1x128xf32>
    %37 = vector.broadcast %36 : vector<1x128xf32> to vector<16x128xf32>
    %38 = arith.addf %35, %37 : vector<16x128xf32>
    %cst_14 = arith.constant 0.000000e+00 : f32
    %39 = vector.broadcast %cst_14 : f32 to vector<16x128xf32>
    %40 = arith.maximumf %38, %39 : vector<16x128xf32>
    %c1_i32_15 = arith.constant 1 : i32
    %41 = tpu.dynamic_rotate %40 by %c1_i32_15 dim 0 : vector<16x128xf32>, i32 -> vector<16x128xf32>
    %cst_16 = arith.constant 0.000000e+00 : f32
    %42 = vector.broadcast %cst_16 : f32 to vector<16x128xf32>
    %43 = vector.shape_cast %20 : vector<16x1xi1> to vector<16x1xi1>
    %44 = vector.broadcast %43 : vector<16x1xi1> to vector<16x128xi1>
    %45 = arith.select %44, %41, %42 : vector<16x128xi1>, vector<16x128xf32>
    %c15_i32_17 = arith.constant 15 : i32
    %46 = tpu.dynamic_rotate %40 by %c15_i32_17 dim 0 : vector<16x128xf32>, i32 -> vector<16x128xf32>
    %cst_18 = arith.constant 0.000000e+00 : f32
    %47 = vector.broadcast %cst_18 : f32 to vector<16x128xf32>
    %48 = vector.shape_cast %22 : vector<16x1xi1> to vector<16x1xi1>
    %49 = vector.broadcast %48 : vector<16x1xi1> to vector<16x128xi1>
    %50 = arith.select %49, %46, %47 : vector<16x128xi1>, vector<16x128xf32>
    %51 = tpu.concatenate %45, %40, %50 in 1 : vector<16x128xf32>, vector<16x128xf32>, vector<16x128xf32> -> vector<16x384xf32>
    %c0_19 = arith.constant 0 : index
    %c0_20 = arith.constant 0 : index
    %52 = vector.load %arg3[%c0_19, %c0_20] : memref<384x128xf32, #tpu.memory_space<vmem>>, vector<384x128xf32>
    %cst_21 = arith.constant dense<0.000000e+00> : vector<16x128xf32>
    %53 = tpu.matmul %51, %52, %cst_21 {dimension_numbers = #tpu.dot_dimension_numbers<[1], [0], [0], [1], [0, 0, 1, 1], [], []>} : vector<16x384xf32>, vector<384x128xf32>, vector<16x128xf32> -> vector<16x128xf32>
    %c0_22 = arith.constant 0 : index
    %c0_23 = arith.constant 0 : index
    %54 = vector.load %arg6[%c0_22, %c0_23] : memref<1x128xf32, #tpu.memory_space<vmem>>, vector<1x128xf32>
    %55 = vector.broadcast %54 : vector<1x128xf32> to vector<16x128xf32>
    %56 = arith.addf %53, %55 : vector<16x128xf32>
    %c0_24 = arith.constant 0 : index
    %c0_25 = arith.constant 0 : index
    %57 = vector.load %arg4[%c0_24, %c0_25] : memref<64x128xf32, #tpu.memory_space<vmem>>, vector<64x128xf32>
    %cst_26 = arith.constant dense<0.000000e+00> : vector<16x128xf32>
    %58 = tpu.matmul %1, %57, %cst_26 {dimension_numbers = #tpu.dot_dimension_numbers<[1], [0], [0], [1], [0, 0, 1, 1], [], []>} : vector<16x64xf32>, vector<64x128xf32>, vector<16x128xf32> -> vector<16x128xf32>
    %c0_27 = arith.constant 0 : index
    %c0_28 = arith.constant 0 : index
    %59 = vector.load %arg7[%c0_27, %c0_28] : memref<1x128xf32, #tpu.memory_space<vmem>>, vector<1x128xf32>
    %60 = vector.broadcast %59 : vector<1x128xf32> to vector<16x128xf32>
    %61 = arith.addf %58, %60 : vector<16x128xf32>
    %62 = arith.addf %56, %61 : vector<16x128xf32>
    %cst_29 = arith.constant 0.000000e+00 : f32
    %63 = vector.broadcast %cst_29 : f32 to vector<16x128xf32>
    %64 = arith.maximumf %62, %63 : vector<16x128xf32>
    %65 = vector.shape_cast %64 : vector<16x128xf32> to vector<1x16x128xf32>
    %c0_30 = arith.constant 0 : index
    %c0_31 = arith.constant 0 : index
    %c0_32 = arith.constant 0 : index
    %66 = vector.load %arg8[%c0_30, %c0_31, %c0_32] : memref<1x16x128xf32, #tpu.memory_space<vmem>>, vector<1x16x128xf32>
    tpu.vector_store %arg8[%c0_30, %c0_31, %c0_32], %65 {strides = array<i32>} : memref<1x16x128xf32, #tpu.memory_space<vmem>>, vector<1x16x128xf32>,
    return
  }
  func.func @transform_0(%arg0: i32) -> (i32, i32, i32) {
    %c0_i32 = arith.constant 0 : i32
    %c0_i32_0 = arith.constant 0 : i32
    %c0_i32_1 = arith.constant 0 : i32
    return %arg0, %c0_i32, %c0_i32_0 : i32, i32, i32
  }
  func.func @transform_1(%arg0: i32) -> (i32, i32) {
    %c0_i32 = arith.constant 0 : i32
    %c0_i32_0 = arith.constant 0 : i32
    %c0_i32_1 = arith.constant 0 : i32
    return %c0_i32, %c0_i32_0 : i32, i32
  }
  func.func @transform_2(%arg0: i32) -> (i32, i32) {
    %c0_i32 = arith.constant 0 : i32
    %c0_i32_0 = arith.constant 0 : i32
    %c0_i32_1 = arith.constant 0 : i32
    return %c0_i32, %c0_i32_0 : i32, i32
  }
  func.func @transform_3(%arg0: i32) -> (i32, i32) {
    %c0_i32 = arith.constant 0 : i32
    %c0_i32_0 = arith.constant 0 : i32
    %c0_i32_1 = arith.constant 0 : i32
    return %c0_i32, %c0_i32_0 : i32, i32
  }
  func.func @transform_4(%arg0: i32) -> (i32, i32) {
    %c0_i32 = arith.constant 0 : i32
    %c0_i32_0 = arith.constant 0 : i32
    %c0_i32_1 = arith.constant 0 : i32
    return %c0_i32, %c0_i32_0 : i32, i32
  }
  func.func @transform_5(%arg0: i32) -> (i32, i32) {
    %c0_i32 = arith.constant 0 : i32
    %c0_i32_0 = arith.constant 0 : i32
    %c0_i32_1 = arith.constant 0 : i32
    return %c0_i32, %c0_i32_0 : i32, i32
  }
  func.func @transform_6(%arg0: i32) -> (i32, i32) {
    %c0_i32 = arith.constant 0 : i32
    %c0_i32_0 = arith.constant 0 : i32
    %c0_i32_1 = arith.constant 0 : i32
    return %c0_i32, %c0_i32_0 : i32, i32
  }
  func.func @transform_7(%arg0: i32) -> (i32, i32, i32) {
    %c0_i32 = arith.constant 0 : i32
    %c0_i32_0 = arith.constant 0 : i32
    %c0_i32_1 = arith.constant 0 : i32
    return %arg0, %c0_i32, %c0_i32_0 : i32, i32, i32
  }
}

</mosaic_0001>

<llo_original>
// kernel: tpu_custom_call.1
$region0: #{tpu_custom_call.1}
  #allocation0 [shape = 'u32[]', space=smem, size = 0x4, offset = 0x4, fixed_abs, tag = 'smem constant byte address 0x4 - core index']
  #allocation1 [shape = 'u32[144,128]{1,0:T(1,128)}', space=vmem, size = 0x12000, scoped, tag = 'internal scratch']
  %s0 = inlined_call_operand.hbm [shape: f32[2,16,64], index: 0, kind: input, shape index: {}]
  %s1 = inlined_call_operand.hbm [shape: f32[192,128], index: 1, kind: input, shape index: {}]
  %s2 = inlined_call_operand.hbm [shape: f32[384,128], index: 2, kind: input, shape index: {}]
  %s3 = inlined_call_operand.hbm [shape: f32[64,128], index: 3, kind: input, shape index: {}]
  %s4 = inlined_call_operand.vmem [shape: f32[1,128], index: 4, kind: input, shape index: {}]
  %s5 = inlined_call_operand.vmem [shape: f32[1,128], index: 5, kind: input, shape index: {}]
  %s6 = inlined_call_operand.vmem [shape: f32[1,128], index: 6, kind: input, shape index: {}]
  %s7 = inlined_call_operand.hbm [shape: f32[2,16,128], index: 7, kind: output, shape index: {}]
  %s8 = sld [smem:[#allocation0]]
  $region77: #{tpu_custom_call.1} parent=0
    _
  %s10 = ssub.s32 1, %s8
  %s11 = scalar_select 0, %s10, %s8
  $region1: #{tpu_custom_call.1} parent=0
    #allocation2 [shape = 'u8[16384]{0}', space=vmem, size = 0x4000, scoped, tag = 'input window, operand 0']
    #allocation3 [shape = 's32[2]{0}', space=sflag, size = 0x8, scoped, tag = 'scoped memory for tpu_custom_call.1']
    #allocation4 [shape = 's32[2]{0}', space=sflag, size = 0x8, scoped, tag = 'scoped memory for tpu_custom_call.1']
    #allocation5 [shape = 'u8[98304]{0}', space=vmem, size = 0x18000, scoped, tag = 'input window, operand 1, single buffered']
    #allocation6 [shape = 's32[1]{0}', space=sflag, size = 0x4, scoped, tag = 'scoped memory for tpu_custom_call.1']
    #allocation7 [shape = 'u8[196608]{0}', space=vmem, size = 0x30000, scoped, tag = 'input window, operand 2, single buffered']
    #allocation8 [shape = 'u8[32768]{0}', space=vmem, size = 0x8000, scoped, tag = 'input window, operand 3, single buffered']
    #allocation9 [shape = 's32[1]{0}', space=sflag, size = 0x4, scoped, tag = 'scoped memory for tpu_custom_call.1']
    #allocation10 [shape = 'u8[16384]{0}', space=vmem, size = 0x4000, scoped, tag = 'output window, operand 0']
    %12 = vsyncpa [#allocation3], 0
    %s13 = scalar_lea.sflag [#allocation3], 1
    %14 = vsyncpa %s13, 0
    %15 = vsyncpa [#allocation6], 0
    %16 = vsyncpa [#allocation9], 0
    %17 = vsyncpa [#allocation4], 0
    %s18 = scalar_lea.sflag [#allocation4], 1
    %19 = vsyncpa %s18, 0
    loop: start=0, step=1, limit=4
    $region2: #{tpu_custom_call.1} parent=1 // loop_pre_header
      _
    $region3: #{tpu_custom_call.1} parent=1 // loop_header
      %s21 = sphi 0, %s25
      %p22 = scmp.ge.s32.totalorder %s21, 4
      %s31 = sphi 0, %s33
      %s34 = sphi 0, %s31
      %s35 = sphi 0, %s34
      %s51 = sphi 0, %s35
      %s55 = sphi 0, %s55
      %s57 = sphi 0, %s55
      %s58 = sphi 0, %s57
      %s72 = sphi 0, %s58
      %s76 = sphi 0, %s76
      %s78 = sphi 0, %s76
      %s79 = sphi 0, %s78
      %s93 = sphi 0, %s79
      %s97 = sphi 0, %s97
      %s99 = sphi 0, %s97
      %s100 = sphi 0, %s99
      %s114 = sphi 0, %s100
      %s118 = sphi 0, %s118
      %s120 = sphi 0, %s118
      %s121 = sphi 0, %s120
      %s135 = sphi 0, %s121
      %s139 = sphi 0, %s139
      %s141 = sphi 0, %s139
      %s142 = sphi 0, %s141
      %s156 = sphi 0, %s142
      %s160 = sphi 0, %s160
      %s162 = sphi 0, %s160
      %s163 = sphi 0, %s162
      %s177 = sphi 0, %s163
      %s183 = sphi 0, %s185
      %s186 = sphi 0, %s183
      %s187 = sphi 0, %s186
      %s203 = sphi 0, %s187
    $region4: #{tpu_custom_call.1} parent=1 // loop_header_branch
      %24 = sbr.rel (%p22) target = $region8
    $region5: #{tpu_custom_call.1} parent=1 // loop_body
      %s26 = ssub.s32 %s21, 1
      %s27 = ssub.s32 %s21, 2
      %s28 = sadd.s32 %s21, 1
      %s29 = ssub.s32 %s21, %s28
      %p30 = scmp.eq.s32.totalorder %s29, 0
      %s32 = sadd.s32 %s31, 1
      %s33 = scalar_select %p30, %s31, %s32
      %p36 = pneg %p30
      %p37 = scmp.eq.s32.totalorder %s21, 1
      %p38 = por %p36, %p37
      %p39 = scmp.ne.s32.totalorder %s31, %s34
      %p40 = scmp.eq.s32.totalorder %s21, 0
      %p41 = por %p39, %p40
      %p42 = scmp.ne.s32.totalorder %s31, %s34
      %p43 = scmp.eq.s32.totalorder %s26, 1
      %p44 = por %p42, %p43
      %p45 = scmp.ne.s32.totalorder %s34, %s35
      %p46 = scmp.eq.s32.totalorder %s26, 0
      %p47 = por %p45, %p46
      %p48 = scmp.ne.s32.totalorder %s34, %s35
      %p49 = scmp.eq.s32.totalorder %s27, 1
      %p50 = por %p48, %p49
      %p52 = scmp.ne.s32.totalorder %s35, %s51
      %p53 = scmp.eq.s32.totalorder %s27, 0
      %p54 = por %p52, %p53
      %s56 = sadd.s32 %s55, 1
      %p59 = scmp.eq.s32.totalorder %s21, 1
      %p60 = scmp.ne.s32.totalorder %s55, %s57
      %p61 = scmp.eq.s32.totalorder %s21, 0
      %p62 = por %p60, %p61
      %p63 = scmp.ne.s32.totalorder %s55, %s57
      %p64 = scmp.eq.s32.totalorder %s26, 1
      %p65 = por %p63, %p64
      %p66 = scmp.ne.s32.totalorder %s57, %s58
      %p67 = scmp.eq.s32.totalorder %s26, 0
      %p68 = por %p66, %p67
      %p69 = scmp.ne.s32.totalorder %s57, %s58
      %p70 = scmp.eq.s32.totalorder %s27, 1
      %p71 = por %p69, %p70
      %p73 = scmp.ne.s32.totalorder %s58, %s72
      %p74 = scmp.eq.s32.totalorder %s27, 0
      %p75 = por %p73, %p74
      %s77 = sadd.s32 %s76, 1
      %p80 = scmp.eq.s32.totalorder %s21, 1
      %p81 = scmp.ne.s32.totalorder %s76, %s78
      %p82 = scmp.eq.s32.totalorder %s21, 0
      %p83 = por %p81, %p82
      %p84 = scmp.ne.s32.totalorder %s76, %s78
      %p85 = scmp.eq.s32.totalorder %s26, 1
      %p86 = por %p84, %p85
      %p87 = scmp.ne.s32.totalorder %s78, %s79
      %p88 = scmp.eq.s32.totalorder %s26, 0
      %p89 = por %p87, %p88
      %p90 = scmp.ne.s32.totalorder %s78, %s79
      %p91 = scmp.eq.s32.totalorder %s27, 1
      %p92 = por %p90, %p91
      %p94 = scmp.ne.s32.totalorder %s79, %s93
      %p95 = scmp.eq.s32.totalorder %s27, 0
      %p96 = por %p94, %p95
      %s98 = sadd.s32 %s97, 1
      %p101 = scmp.eq.s32.totalorder %s21, 1
      %p102 = scmp.ne.s32.totalorder %s97, %s99
      %p103 = scmp.eq.s32.totalorder %s21, 0
      %p104 = por %p102, %p103
      %p105 = scmp.ne.s32.totalorder %s97, %s99
      %p106 = scmp.eq.s32.totalorder %s26, 1
      %p107 = por %p105, %p106
      %p108 = scmp.ne.s32.totalorder %s99, %s100
      %p109 = scmp.eq.s32.totalorder %s26, 0
      %p110 = por %p108, %p109
      %p111 = scmp.ne.s32.totalorder %s99, %s100
      %p112 = scmp.eq.s32.totalorder %s27, 1
      %p113 = por %p111, %p112
      %p115 = scmp.ne.s32.totalorder %s100, %s114
      %p116 = scmp.eq.s32.totalorder %s27, 0
      %p117 = por %p115, %p116
      %s119 = sadd.s32 %s118, 1
      %p122 = scmp.eq.s32.totalorder %s21, 1
      %p123 = scmp.ne.s32.totalorder %s118, %s120
      %p124 = scmp.eq.s32.totalorder %s21, 0
      %p125 = por %p123, %p124
      %p126 = scmp.ne.s32.totalorder %s118, %s120
      %p127 = scmp.eq.s32.totalorder %s26, 1
      %p128 = por %p126, %p127
      %p129 = scmp.ne.s32.totalorder %s120, %s121
      %p130 = scmp.eq.s32.totalorder %s26, 0
      %p131 = por %p129, %p130
      %p132 = scmp.ne.s32.totalorder %s120, %s121
      %p133 = scmp.eq.s32.totalorder %s27, 1
      %p134 = por %p132, %p133
      %p136 = scmp.ne.s32.totalorder %s121, %s135
      %p137 = scmp.eq.s32.totalorder %s27, 0
      %p138 = por %p136, %p137
      %s140 = sadd.s32 %s139, 1
      %p143 = scmp.eq.s32.totalorder %s21, 1
      %p144 = scmp.ne.s32.totalorder %s139, %s141
      %p145 = scmp.eq.s32.totalorder %s21, 0
      %p146 = por %p144, %p145
      %p147 = scmp.ne.s32.totalorder %s139, %s141
      %p148 = scmp.eq.s32.totalorder %s26, 1
      %p149 = por %p147, %p148
      %p150 = scmp.ne.s32.totalorder %s141, %s142
      %p151 = scmp.eq.s32.totalorder %s26, 0
      %p152 = por %p150, %p151
      %p153 = scmp.ne.s32.totalorder %s141, %s142
      %p154 = scmp.eq.s32.totalorder %s27, 1
      %p155 = por %p153, %p154
      %p157 = scmp.ne.s32.totalorder %s142, %s156
      %p158 = scmp.eq.s32.totalorder %s27, 0
      %p159 = por %p157, %p158
      %s161 = sadd.s32 %s160, 1
      %p164 = scmp.eq.s32.totalorder %s21, 1
      %p165 = scmp.ne.s32.totalorder %s160, %s162
      %p166 = scmp.eq.s32.totalorder %s21, 0
      %p167 = por %p165, %p166
      %p168 = scmp.ne.s32.totalorder %s160, %s162
      %p169 = scmp.eq.s32.totalorder %s26, 1
      %p170 = por %p168, %p169
      %p171 = scmp.ne.s32.totalorder %s162, %s163
      %p172 = scmp.eq.s32.totalorder %s26, 0
      %p173 = por %p171, %p172
      %p174 = scmp.ne.s32.totalorder %s162, %s163
      %p175 = scmp.eq.s32.totalorder %s27, 1
      %p176 = por %p174, %p175
      %p178 = scmp.ne.s32.totalorder %s163, %s177
      %p179 = scmp.eq.s32.totalorder %s27, 0
      %p180 = por %p178, %p179
      %s181 = ssub.s32 %s21, %s28
      %p182 = scmp.eq.s32.totalorder %s181, 0
      %s184 = sadd.s32 %s183, 1
      %s185 = scalar_select %p182, %s183, %s184
      %p188 = pneg %p182
      %p189 = scmp.eq.s32.totalorder %s21, 1
      %p190 = por %p188, %p189
      %p191 = scmp.ne.s32.totalorder %s183, %s186
      %p192 = scmp.eq.s32.totalorder %s21, 0
      %p193 = por %p191, %p192
      %p194 = scmp.ne.s32.totalorder %s183, %s186
      %p195 = scmp.eq.s32.totalorder %s26, 1
      %p196 = por %p194, %p195
      %p197 = scmp.ne.s32.totalorder %s186, %s187
      %p198 = scmp.eq.s32.totalorder %s26, 0
      %p199 = por %p197, %p198
      %p200 = scmp.ne.s32.totalorder %s186, %s187
      %p201 = scmp.eq.s32.totalorder %s27, 1
      %p202 = por %p200, %p201
      %p204 = scmp.ne.s32.totalorder %s187, %s203
      %p205 = scmp.eq.s32.totalorder %s27, 0
      %p206 = por %p204, %p205
      %p207 = scmp.le.s32.totalorder 1, %s21
      %p208 = scmp.lt.s32.totalorder %s21, 3
      %p209 = pnand %p207, %p208
      %p210 = pneg %p209
      // Predicated region
      $region9: #{tpu_custom_call.1} parent=5 // pred_check
        _
      $region10: #{tpu_custom_call.1} parent=5 // pred_check_branch
        %212 = sbr.rel (%p209) target = $region12
      $region11: #{tpu_custom_call.1} parent=5 // pred_region
        %s213 = ssub.s32 %s21, 1
        // Predicated region
        $region13: #{tpu_custom_call.1} parent=11 // pred_check
          %p214 = pneg %p68
        $region14: #{tpu_custom_call.1} parent=11 // pred_check_branch
          %216 = sbr.rel (%p214) target = $region16
        $region15: #{tpu_custom_call.1} parent=11 // pred_region
          %s218 = ssub.s32 3072, 3072
          %219 = vsyncadd [#allocation6], %s218
          %s220 = sshll.u32 [#allocation5], 4
          %s221 = int_to_ptr.vmem [resolvable:$true] %s220
          %226 = dma.hbm_to_vmem [thread:$0]  %s1, 3072, %s221, [#allocation6], 128, 128, 8
        $region16: #{tpu_custom_call.1} parent=11 // pred_fallthru
          _
        // Predicated region
        $region17: #{tpu_custom_call.1} parent=11 // pred_check
          %p227 = pneg %p89
        $region18: #{tpu_custom_call.1} parent=11 // pred_check_branch
          %229 = sbr.rel (%p227) target = $region20
        $region19: #{tpu_custom_call.1} parent=11 // pred_region
          %s231 = ssub.s32 6144, 6144
          %232 = vsyncadd [#allocation6], %s231
          %s233 = sshll.u32 [#allocation7], 4
          %s234 = int_to_ptr.vmem [resolvable:$true] %s233
          %239 = dma.hbm_to_vmem [thread:$0]  %s2, 6144, %s234, [#allocation6], 128, 128, 8
        $region20: #{tpu_custom_call.1} parent=11 // pred_fallthru
          _
        // Predicated region
        $region21: #{tpu_custom_call.1} parent=11 // pred_check
          %p240 = pneg %p110
        $region22: #{tpu_custom_call.1} parent=11 // pred_check_branch
          %242 = sbr.rel (%p240) target = $region24
        $region23: #{tpu_custom_call.1} parent=11 // pred_region
          %s244 = ssub.s32 1024, 1024
          %245 = vsyncadd [#allocation9], %s244
          %s246 = sshll.u32 [#allocation8], 4
          %s247 = int_to_ptr.vmem [resolvable:$true] %s246
          %252 = dma.hbm_to_vmem [thread:$0]  %s3, 1024, %s247, [#allocation9], 128, 128, 8
        $region24: #{tpu_custom_call.1} parent=11 // pred_fallthru
          _
        // Predicated region
        $region25: #{tpu_custom_call.1} parent=11 // pred_check
          %p253 = pneg %p131
        $region26: #{tpu_custom_call.1} parent=11 // pred_check_branch
          %255 = sbr.rel (%p253) target = $region28
        $region27: #{tpu_custom_call.1} parent=11 // pred_region
          _
        $region28: #{tpu_custom_call.1} parent=11 // pred_fallthru
          _
        // Predicated region
        $region29: #{tpu_custom_call.1} parent=11 // pred_check
          %p256 = pneg %p152
        $region30: #{tpu_custom_call.1} parent=11 // pred_check_branch
          %258 = sbr.rel (%p256) target = $region32
        $region31: #{tpu_custom_call.1} parent=11 // pred_region
          _
        $region32: #{tpu_custom_call.1} parent=11 // pred_fallthru
          _
        // Predicated region
        $region33: #{tpu_custom_call.1} parent=11 // pred_check
          %p259 = pneg %p173
        $region34: #{tpu_custom_call.1} parent=11 // pred_check_branch
          %261 = sbr.rel (%p259) target = $region36
        $region35: #{tpu_custom_call.1} parent=11 // pred_region
          _
        $region36: #{tpu_custom_call.1} parent=11 // pred_fallthru
          _
      $region12: #{tpu_custom_call.1} parent=5 // pred_fallthru
        _
      %p262 = scmp.lt.s32.totalorder %s21, 2
      // Predicated region
      $region37: #{tpu_custom_call.1} parent=5 // pred_check
        %p263 = pneg %p262
      $region38: #{tpu_custom_call.1} parent=5 // pred_check_branch
        %265 = sbr.rel (%p263) target = $region40
      $region39: #{tpu_custom_call.1} parent=5 // pred_region
        // Predicated region
        $region41: #{tpu_custom_call.1} parent=39 // pred_check
          %p266 = pneg %p41
        $region42: #{tpu_custom_call.1} parent=39 // pred_check_branch
          %268 = sbr.rel (%p266) target = $region44
        $region43: #{tpu_custom_call.1} parent=39 // pred_region
          %s269 = sand.u32 %s31, 1
          %s270 = scalar_lea.sflag [#allocation3], %s269
          %s271 = sand.u32 %s31, 1
          %s272 = smul.addr %s271, 16
          %s273 = scalar_lea.vmem [#allocation2], %s272
          %s275 = ssub.s32 256, 256
          %276 = vsyncadd %s270, %s275
          %s277 = smul.addr %s21, 2
          %s278 = smul.addr %s277, 128
          %s279 = scalar_lea.hbm %s0, %s278
          %s280 = sshll.u32 %s273, 4
          %s281 = int_to_ptr.vmem [resolvable:$true] %s280
          %286 = dma.hbm_to_vmem [thread:$0]  %s279, 256, %s281, %s270, 128, 128, 8
        $region44: #{tpu_custom_call.1} parent=39 // pred_fallthru
          _
      $region40: #{tpu_custom_call.1} parent=5 // pred_fallthru
        _
      %p287 = scmp.le.s32.totalorder 1, %s21
      %p288 = scmp.lt.s32.totalorder %s21, 3
      %p289 = pnand %p287, %p288
      %p290 = pneg %p289
      // Predicated region
      $region45: #{tpu_custom_call.1} parent=5 // pred_check
        _
      $region46: #{tpu_custom_call.1} parent=5 // pred_check_branch
        %292 = sbr.rel (%p289) target = $region48
      $region47: #{tpu_custom_call.1} parent=5 // pred_region
        %s293 = ssub.s32 %s21, 1
        %s294 = sand.u32 %s34, 1
        %s295 = scalar_lea.sflag [#allocation3], %s294
        %s296 = sand.u32 %s34, 1
        %s297 = smul.addr %s296, 16
        %s298 = scalar_lea.vmem [#allocation2], %s297
        // Predicated region
        $region49: #{tpu_custom_call.1} parent=47 // pred_check
          %p299 = pneg %p47
        $region50: #{tpu_custom_call.1} parent=47 // pred_check_branch
          %301 = sbr.rel (%p299) target = $region52
        $region51: #{tpu_custom_call.1} parent=47 // pred_region
          %302 = dma.done %s295, 256
        $region52: #{tpu_custom_call.1} parent=47 // pred_fallthru
          _
        // Predicated region
        $region53: #{tpu_custom_call.1} parent=47 // pred_check
          %p303 = pneg %p68
        $region54: #{tpu_custom_call.1} parent=47 // pred_check_branch
          %305 = sbr.rel (%p303) target = $region56
        $region55: #{tpu_custom_call.1} parent=47 // pred_region
          %306 = dma.done [#allocation6], 3072
        $region56: #{tpu_custom_call.1} parent=47 // pred_fallthru
          _
        // Predicated region
        $region57: #{tpu_custom_call.1} parent=47 // pred_check
          %p307 = pneg %p89
        $region58: #{tpu_custom_call.1} parent=47 // pred_check_branch
          %309 = sbr.rel (%p307) target = $region60
        $region59: #{tpu_custom_call.1} parent=47 // pred_region
          %310 = dma.done [#allocation6], 6144
        $region60: #{tpu_custom_call.1} parent=47 // pred_fallthru
          _
        // Predicated region
        $region61: #{tpu_custom_call.1} parent=47 // pred_check
          %p311 = pneg %p110
        $region62: #{tpu_custom_call.1} parent=47 // pred_check_branch
          %313 = sbr.rel (%p311) target = $region64
        $region63: #{tpu_custom_call.1} parent=47 // pred_region
          %314 = dma.done [#allocation9], 1024
        $region64: #{tpu_custom_call.1} parent=47 // pred_fallthru
          _
        %s315 = sand.u32 %s34, 1
        %s316 = scalar_lea.sflag [#allocation3], %s315
        %s317 = sand.u32 %s34, 1
        %s318 = smul.addr %s317, 16
        %s319 = scalar_lea.vmem [#allocation2], %s318
        %p320 = pneg %p47
        %p321 = pneg %p44
        %p322 = pneg %p68
        %p323 = pneg %p65
        %p324 = pneg %p89
        %p325 = pneg %p86
        %p326 = pneg %p110
        %p327 = pneg %p107
        %p328 = pneg %p131
        %p329 = pneg %p128
        %p330 = pneg %p152
        %p331 = pneg %p149
        %p332 = pneg %p173
        %p333 = pneg %p170
        %p334 = pneg %p199
        %p335 = pneg %p196
        %s336 = sand.u32 %s186, 1
        %s337 = scalar_lea.sflag [#allocation4], %s336
        %s338 = sand.u32 %s186, 1
        %s339 = smul.addr %s338, 16
        %s340 = scalar_lea.vmem [#allocation10], %s339
        %v341 = vld [vmem:[%s298] sm:$0xff]
        %v342 = vld [vmem:[%s298 + $0x8] sm:$0xff]
        %v343 = vlaneseq
        %v344 = vshrl.u32 %v343, 7
        %v345 = vadd.s32 %v344, 8
        %vm346 = vcmp.lt.s32.totalorder %v344, 0
        %v347 = vsub.s32 0, %v344
        %v348 = vsel %vm346, %v347, %v344
        %v349 = vshrl.u32 %v348, 4
        %v350 = vand.u32 %v348, 15
        %v351 = vsub.s32 0, %v350
        %v352 = vsel %vm346, %v351, %v350
        %vm353 = vcmp.lt.s32.totalorder %v345, 0
        %v354 = vsub.s32 0, %v345
        %v355 = vsel %vm353, %v354, %v345
        %v356 = vshrl.u32 %v355, 4
        %v357 = vand.u32 %v355, 15
        %v358 = vsub.s32 0, %v357
        %v359 = vsel %vm353, %v358, %v357
        %vm360 = vcmp.ne.s32.totalorder %v352, 0
        %vm361 = vcmp.ne.s32.totalorder %v359, 0
        %vm362 = vcmp.lt.s32.totalorder %v352, 0
        %vm363 = vcmp.lt.s32.totalorder %v359, 0
        %vm364 = vmand %vm362, %vm360
        %vm365 = vmand %vm363, %vm361
        %v366 = vadd.s32 %v352, 16
        %v367 = vadd.s32 %v359, 16
        %v368 = vsel %vm364, %v366, %v352
        %v369 = vsel %vm365, %v367, %v359
        %vm370 = vcmp.ge.s32.totalorder %v368, 1
        %vm371 = vcmp.ge.s32.totalorder %v369, 1
        %vm372 = vcmp.lt.s32.totalorder %v368, 15
        %vm373 = vcmp.lt.s32.totalorder %v369, 15
        %v374 = vrot.slane %v341, 7
        %v375 = vrot.slane %v342, 7
        %vm376 = vcmp.lt.s32.totalorder %v344, 1
        %v377 = vsel %vm376, %v374, %v375
        %v378 = vsel %vm376, %v375, %v374
        %v379 = vsel %vm370, 1, 0
        %v380 = vsel %vm371, 1, 0
        %vm381 = vcmp.eq.s32.totalorder %v379, 1
        %vm382 = vcmp.eq.s32.totalorder %v380, 1
        %v383 = vsel %vm381, %v378, 0.0
        %v384 = vsel %vm382, %v377, 0.0
        %v385 = vrot.slane %v341, 1
        %v386 = vrot.slane %v342, 1
        %vm387 = vcmp.lt.s32.totalorder %v344, 7
        %v388 = vsel %vm387, %v385, %v386
        %v389 = vsel %vm387, %v386, %v385
        %v390 = vsel %vm372, 1, 0
        %v391 = vsel %vm373, 1, 0
        %vm392 = vcmp.eq.s32.totalorder %v390, 1
        %vm393 = vcmp.eq.s32.totalorder %v391, 1
        %v394 = vsel %vm392, %v388, 0.0
        %v395 = vsel %vm393, %v389, 0.0
        %398 = vrot.lane.b32.xlu0 %v341, 64
        %v399 = vpop.permute.xlu0 %398
        %400 = vrot.lane.b32.xlu0 %v342, 64
        %v401 = vpop.permute.xlu0 %400
        %vm404 = vcmask 523264
        %v405 = vsel %vm404, %v383, %v399
        %v406 = vsel %vm404, %v384, %v401
        %v407 = vld [vmem:[#allocation5] sm:$0xff]
        %v408 = vld [vmem:[#allocation5 + $0x8] sm:$0xff]
        %v409 = vld [vmem:[#allocation5 + $0x10] sm:$0xff]
        %v410 = vld [vmem:[#allocation5 + $0x18] sm:$0xff]
        %v411 = vld [vmem:[#allocation5 + $0x20] sm:$0xff]
        %v412 = vld [vmem:[#allocation5 + $0x28] sm:$0xff]
        %v413 = vld [vmem:[#allocation5 + $0x30] sm:$0xff]
        %v414 = vld [vmem:[#allocation5 + $0x38] sm:$0xff]
        %v415 = vld [vmem:[#allocation5 + $0x40] sm:$0xff]
        %v416 = vld [vmem:[#allocation5 + $0x48] sm:$0xff]
        %v417 = vld [vmem:[#allocation5 + $0x50] sm:$0xff]
        %v418 = vld [vmem:[#allocation5 + $0x58] sm:$0xff]
        %v419 = vld [vmem:[#allocation5 + $0x60] sm:$0xff]
        %v420 = vld [vmem:[#allocation5 + $0x68] sm:$0xff]
        %v421 = vld [vmem:[#allocation5 + $0x70] sm:$0xff]
        %v422 = vld [vmem:[#allocation5 + $0x78] sm:$0xff]
        %v423 = vld [vmem:[#allocation5 + $0x80] sm:$0xff]
        %v424 = vld [vmem:[#allocation5 + $0x88] sm:$0xff]
        %v425 = vld [vmem:[#allocation5 + $0x90] sm:$0xff]
        %v426 = vld [vmem:[#allocation5 + $0x98] sm:$0xff]
        %v427 = vld [vmem:[#allocation5 + $0xa0] sm:$0xff]
        %v428 = vld [vmem:[#allocation5 + $0xa8] sm:$0xff]
        %v429 = vld [vmem:[#allocation5 + $0xb0] sm:$0xff]
        %v430 = vld [vmem:[#allocation5 + $0xb8] sm:$0xff]
        %v431 = vld [vmem:[%s4] sm:$0x1]
        %v433 = vlaneseq
        %v434 = vshrl.u32 %v433, 7
        %v435 = vsub.s32 0, %v434
        %v436 = vrot.slane %v431, %v435
        %v439 = vsel %vm404, %v394, 0
        %v442 = vsel %vm404, %v395, 0
        %444 = vmatprep.subr.mxu0 0.0
        %445 = vmatpush1.msra.mxu0 %v407
        %446 = vmatprep.subr.mxu0 0.0
        %447 = vmatpush1.msra.mxu0 %v408
        %448 = vmatprep.subr.mxu0 0.0
        %449 = vmatpush1.msra.mxu0 %v409
        %450 = vmatprep.subr.mxu0 0.0
        %451 = vmatpush1.msra.mxu0 %v410
        %452 = vmatprep.subr.mxu0 0.0
        %453 = vmatpush1.msra.mxu0 %v411
        %454 = vmatprep.subr.mxu0 0.0
        %455 = vmatpush1.msra.mxu0 %v412
        %456 = vmatprep.subr.mxu0 0.0
        %457 = vmatpush1.msra.mxu0 %v413
        %458 = vmatprep.subr.mxu0 0.0
        %459 = vmatpush1.msra.mxu0 %v414
        %460 = vmatprep.subr.mxu0 0.0
        %461 = vmatpush1.msra.mxu0 %v415
        %462 = vmatprep.subr.mxu0 0.0
        %463 = vmatpush1.msra.mxu0 %v416
        %464 = vmatprep.subr.mxu0 0.0
        %465 = vmatpush1.msra.mxu0 %v417
        %466 = vmatprep.subr.mxu0 0.0
        %467 = vmatpush1.msra.mxu0 %v418
        %468 = vmatprep.subr.mxu0 0.0
        %469 = vmatpush1.msra.mxu0 %v419
        %470 = vmatprep.subr.mxu0 0.0
        %471 = vmatpush1.msra.mxu0 %v420
        %472 = vmatprep.subr.mxu0 0.0
        %473 = vmatpush1.msra.mxu0 %v421
        %474 = vmatprep.subr.mxu0 0.0
        %475 = vmatpush1.msra.mxu0 %v422
        %476 = vmatprep.subr.mxu0 0.0
        %477 = vmatpush1.msra.mxu0 %v423
        %478 = vmatprep.subr.mxu0 0.0
        %479 = vmatpush1.msra.mxu0 %v424
        %480 = vmatprep.subr.mxu0 0.0
        %481 = vmatpush1.msra.mxu0 %v425
        %482 = vmatprep.subr.mxu0 0.0
        %483 = vmatpush1.msra.mxu0 %v426
        %484 = vmatprep.subr.mxu0 0.0
        %485 = vmatpush1.msra.mxu0 %v427
        %486 = vmatprep.subr.mxu0 0.0
        %487 = vmatpush1.msra.mxu0 %v428
        %488 = vmatprep.subr.mxu0 0.0
        %489 = vmatpush1.msra.mxu0 %v429
        %490 = vmatprep.subr.mxu0 0.0
        %491 = vmatpush1.msra.mxu0 %v430
        %492 = vmatprep.subr.mxu0 0.0
        %493 = vmatpush1.msra.mxu0 0.0
        %494 = vmatprep.subr.mxu0 0.0
        %495 = vmatpush1.msra.mxu0 0.0
        %496 = vmatprep.subr.mxu0 0.0
        %497 = vmatpush1.msra.mxu0 0.0
        %498 = vmatprep.subr.mxu0 0.0
        %499 = vmatpush1.msra.mxu0 0.0
        %500 = vmatprep.subr.mxu0 0.0
        %501 = vmatpush1.msra.mxu0 0.0
        %502 = vmatprep.subr.mxu0 0.0
        %503 = vmatpush1.msra.mxu0 0.0
        %504 = vmatprep.subr.mxu0 0.0
        %505 = vmatpush1.msra.mxu0 0.0
        %506 = vmatprep.subr.mxu0 0.0
        %507 = vmatpush1.msra.mxu0 0.0
        %508 = vmatprep.mubr.f32.mxu0 %v439
        %509 = vmatmul.mubr.f32.gmra.mrb[0].mxu0 %v405
        %v510 = vpop.f32.mrb[0].mxu0
        %v511 = vadd.f32 %v436, %v510
        %v512 = vpop.f32.mrb[0].mxu0
        %513 = vmatprep.mubr.f32.mxu0 %v442
        %514 = vmatmul.mubr.f32.gmra.mrb[0].mxu0 %v406
        %v515 = vpop.f32.mrb[0].mxu0
        %v516 = vadd.f32 %v436, %v515
        %v517 = vpop.f32.mrb[0].mxu0
        %518 = vdwg.mxu0
        %v519 = vmax.f32 %v511, 0.0
        %v520 = vmax.f32 %v516, 0.0
        %v521 = vrot.slane %v519, 7
        %v522 = vrot.slane %v520, 7
        %v523 = vsel %vm376, %v521, %v522
        %v524 = vsel %vm376, %v522, %v521
        %v525 = vsel %vm381, %v524, 0.0
        %v526 = vsel %vm382, %v523, 0.0
        %v527 = vrot.slane %v519, 1
        %v528 = vrot.slane %v520, 1
        %v529 = vsel %vm387, %v527, %v528
        %v530 = vsel %vm387, %v528, %v527
        %v531 = vsel %vm392, %v529, 0.0
        %v532 = vsel %vm393, %v530, 0.0
        %v533 = vld [vmem:[#allocation7] sm:$0xff]
        %v534 = vld [vmem:[#allocation7 + $0x8] sm:$0xff]
        %v535 = vld [vmem:[#allocation7 + $0x10] sm:$0xff]
        %v536 = vld [vmem:[#allocation7 + $0x18] sm:$0xff]
        %v537 = vld [vmem:[#allocation7 + $0x20] sm:$0xff]
        %v538 = vld [vmem:[#allocation7 + $0x28] sm:$0xff]
        %v539 = vld [vmem:[#allocation7 + $0x30] sm:$0xff]
        %v540 = vld [vmem:[#allocation7 + $0x38] sm:$0xff]
        %v541 = vld [vmem:[#allocation7 + $0x40] sm:$0xff]
        %v542 = vld [vmem:[#allocation7 + $0x48] sm:$0xff]
        %v543 = vld [vmem:[#allocation7 + $0x50] sm:$0xff]
        %v544 = vld [vmem:[#allocation7 + $0x58] sm:$0xff]
        %v545 = vld [vmem:[#allocation7 + $0x60] sm:$0xff]
        %v546 = vld [vmem:[#allocation7 + $0x68] sm:$0xff]
        %v547 = vld [vmem:[#allocation7 + $0x70] sm:$0xff]
        %v548 = vld [vmem:[#allocation7 + $0x78] sm:$0xff]
        %v549 = vld [vmem:[#allocation7 + $0x80] sm:$0xff]
        %v550 = vld [vmem:[#allocation7 + $0x88] sm:$0xff]
        %v551 = vld [vmem:[#allocation7 + $0x90] sm:$0xff]
        %v552 = vld [vmem:[#allocation7 + $0x98] sm:$0xff]
        %v553 = vld [vmem:[#allocation7 + $0xa0] sm:$0xff]
        %v554 = vld [vmem:[#allocation7 + $0xa8] sm:$0xff]
        %v555 = vld [vmem:[#allocation7 + $0xb0] sm:$0xff]
        %v556 = vld [vmem:[#allocation7 + $0xb8] sm:$0xff]
        %v557 = vld [vmem:[#allocation7 + $0xc0] sm:$0xff]
        %v558 = vld [vmem:[#allocation7 + $0xc8] sm:$0xff]
        %v559 = vld [vmem:[#allocation7 + $0xd0] sm:$0xff]
        %v560 = vld [vmem:[#allocation7 + $0xd8] sm:$0xff]
        %v561 = vld [vmem:[#allocation7 + $0xe0] sm:$0xff]
        %v562 = vld [vmem:[#allocation7 + $0xe8] sm:$0xff]
        %v563 = vld [vmem:[#allocation7 + $0xf0] sm:$0xff]
        %v564 = vld [vmem:[#allocation7 + $0xf8] sm:$0xff]
        %v565 = vld [vmem:[#allocation7 + $0x100] sm:$0xff]
        %v566 = vld [vmem:[#allocation7 + $0x108] sm:$0xff]
        %v567 = vld [vmem:[#allocation7 + $0x110] sm:$0xff]
        %v568 = vld [vmem:[#allocation7 + $0x118] sm:$0xff]
        %v569 = vld [vmem:[#allocation7 + $0x120] sm:$0xff]
        %v570 = vld [vmem:[#allocation7 + $0x128] sm:$0xff]
        %v571 = vld [vmem:[#allocation7 + $0x130] sm:$0xff]
        %v572 = vld [vmem:[#allocation7 + $0x138] sm:$0xff]
        %v573 = vld [vmem:[#allocation7 + $0x140] sm:$0xff]
        %v574 = vld [vmem:[#allocation7 + $0x148] sm:$0xff]
        %v575 = vld [vmem:[#allocation7 + $0x150] sm:$0xff]
        %v576 = vld [vmem:[#allocation7 + $0x158] sm:$0xff]
        %v577 = vld [vmem:[#allocation7 + $0x160] sm:$0xff]
        %v578 = vld [vmem:[#allocation7 + $0x168] sm:$0xff]
        %v579 = vld [vmem:[#allocation7 + $0x170] sm:$0xff]
        %v580 = vld [vmem:[#allocation7 + $0x178] sm:$0xff]
        %v581 = vld [vmem:[%s5] sm:$0x1]
        %v583 = vlaneseq
        %v584 = vshrl.u32 %v583, 7
        %v585 = vsub.s32 0, %v584
        %v586 = vrot.slane %v581, %v585
        %588 = vmatprep.subr.mxu0 0.0
        %589 = vmatpush1.msra.mxu0 %v533
        %590 = vmatprep.subr.mxu0 0.0
        %591 = vmatpush1.msra.mxu0 %v534
        %592 = vmatprep.subr.mxu0 0.0
        %593 = vmatpush1.msra.mxu0 %v535
        %594 = vmatprep.subr.mxu0 0.0
        %595 = vmatpush1.msra.mxu0 %v536
        %596 = vmatprep.subr.mxu0 0.0
        %597 = vmatpush1.msra.mxu0 %v537
        %598 = vmatprep.subr.mxu0 0.0
        %599 = vmatpush1.msra.mxu0 %v538
        %600 = vmatprep.subr.mxu0 0.0
        %601 = vmatpush1.msra.mxu0 %v539
        %602 = vmatprep.subr.mxu0 0.0
        %603 = vmatpush1.msra.mxu0 %v540
        %604 = vmatprep.subr.mxu0 0.0
        %605 = vmatpush1.msra.mxu0 %v541
        %606 = vmatprep.subr.mxu0 0.0
        %607 = vmatpush1.msra.mxu0 %v542
        %608 = vmatprep.subr.mxu0 0.0
        %609 = vmatpush1.msra.mxu0 %v543
        %610 = vmatprep.subr.mxu0 0.0
        %611 = vmatpush1.msra.mxu0 %v544
        %612 = vmatprep.subr.mxu0 0.0
        %613 = vmatpush1.msra.mxu0 %v545
        %614 = vmatprep.subr.mxu0 0.0
        %615 = vmatpush1.msra.mxu0 %v546
        %616 = vmatprep.subr.mxu0 0.0
        %617 = vmatpush1.msra.mxu0 %v547
        %618 = vmatprep.subr.mxu0 0.0
        %619 = vmatpush1.msra.mxu0 %v548
        %620 = vmatprep.subr.mxu0 0.0
        %621 = vmatpush1.msra.mxu0 %v549
        %622 = vmatprep.subr.mxu0 0.0
        %623 = vmatpush1.msra.mxu0 %v550
        %624 = vmatprep.subr.mxu0 0.0
        %625 = vmatpush1.msra.mxu0 %v551
        %626 = vmatprep.subr.mxu0 0.0
        %627 = vmatpush1.msra.mxu0 %v552
        %628 = vmatprep.subr.mxu0 0.0
        %629 = vmatpush1.msra.mxu0 %v553
        %630 = vmatprep.subr.mxu0 0.0
        %631 = vmatpush1.msra.mxu0 %v554
        %632 = vmatprep.subr.mxu0 0.0
        %633 = vmatpush1.msra.mxu0 %v555
        %634 = vmatprep.subr.mxu0 0.0
        %635 = vmatpush1.msra.mxu0 %v556
        %636 = vmatprep.subr.mxu0 0.0
        %637 = vmatpush1.msra.mxu0 %v557
        %638 = vmatprep.subr.mxu0 0.0
        %639 = vmatpush1.msra.mxu0 %v558
        %640 = vmatprep.subr.mxu0 0.0
        %641 = vmatpush1.msra.mxu0 %v559
        %642 = vmatprep.subr.mxu0 0.0
        %643 = vmatpush1.msra.mxu0 %v560
        %644 = vmatprep.subr.mxu0 0.0
        %645 = vmatpush1.msra.mxu0 %v561
        %646 = vmatprep.subr.mxu0 0.0
        %647 = vmatpush1.msra.mxu0 %v562
        %648 = vmatprep.subr.mxu0 0.0
        %649 = vmatpush1.msra.mxu0 %v563
        %650 = vmatprep.subr.mxu0 0.0
        %651 = vmatpush1.msra.mxu0 %v564
        %652 = vmatprep.mubr.f32.mxu0 %v519
        %653 = vmatmul.mubr.f32.gmra.mrb[0].mxu0 %v525
        %v654 = vpop.f32.mrb[0].mxu0
        %v655 = vadd.f32 %v586, %v654
        %v656 = vpop.f32.mrb[0].mxu0
        %657 = vmatprep.mubr.f32.mxu0 %v520
        %658 = vmatmul.mubr.f32.gmra.mrb[0].mxu0 %v526
        %v659 = vpop.f32.mrb[0].mxu0
        %v660 = vadd.f32 %v586, %v659
        %v661 = vpop.f32.mrb[0].mxu0
        %662 = vdwg.mxu0
        %663 = vmatprep.subr.mxu0 0.0
        %664 = vmatpush1.msra.mxu0 %v565
        %665 = vmatprep.subr.mxu0 0.0
        %666 = vmatpush1.msra.mxu0 %v566
        %667 = vmatprep.subr.mxu0 0.0
        %668 = vmatpush1.msra.mxu0 %v567
        %669 = vmatprep.subr.mxu0 0.0
        %670 = vmatpush1.msra.mxu0 %v568
        %671 = vmatprep.subr.mxu0 0.0
        %672 = vmatpush1.msra.mxu0 %v569
        %673 = vmatprep.subr.mxu0 0.0
        %674 = vmatpush1.msra.mxu0 %v570
        %675 = vmatprep.subr.mxu0 0.0
        %676 = vmatpush1.msra.mxu0 %v571
        %677 = vmatprep.subr.mxu0 0.0
        %678 = vmatpush1.msra.mxu0 %v572
        %679 = vmatprep.subr.mxu0 0.0
        %680 = vmatpush1.msra.mxu0 %v573
        %681 = vmatprep.subr.mxu0 0.0
        %682 = vmatpush1.msra.mxu0 %v574
        %683 = vmatprep.subr.mxu0 0.0
        %684 = vmatpush1.msra.mxu0 %v575
        %685 = vmatprep.subr.mxu0 0.0
        %686 = vmatpush1.msra.mxu0 %v576
        %687 = vmatprep.subr.mxu0 0.0
        %688 = vmatpush1.msra.mxu0 %v577
        %689 = vmatprep.subr.mxu0 0.0
        %690 = vmatpush1.msra.mxu0 %v578
        %691 = vmatprep.subr.mxu0 0.0
        %692 = vmatpush1.msra.mxu0 %v579
        %693 = vmatprep.subr.mxu0 0.0
        %694 = vmatpush1.msra.mxu0 %v580
        %695 = vmatprep.subr.mxu0 0.0
        %696 = vmatpush1.msra.mxu0 0.0
        %697 = vmatprep.subr.mxu0 0.0
        %698 = vmatpush1.msra.mxu0 0.0
        %699 = vmatprep.subr.mxu0 0.0
        %700 = vmatpush1.msra.mxu0 0.0
        %701 = vmatprep.subr.mxu0 0.0
        %702 = vmatpush1.msra.mxu0 0.0
        %703 = vmatprep.subr.mxu0 0.0
        %704 = vmatpush1.msra.mxu0 0.0
        %705 = vmatprep.subr.mxu0 0.0
        %706 = vmatpush1.msra.mxu0 0.0
        %707 = vmatprep.subr.mxu0 0.0
        %708 = vmatpush1.msra.mxu0 0.0
        %709 = vmatprep.subr.mxu0 0.0
        %710 = vmatpush1.msra.mxu0 0.0
        %711 = vmatprep.subr.mxu0 0.0
        %712 = vmatpush1.msra.mxu0 0.0
        %713 = vmatprep.subr.mxu0 0.0
        %714 = vmatpush1.msra.mxu0 0.0
        %715 = vmatprep.subr.mxu0 0.0
        %716 = vmatpush1.msra.mxu0 0.0
        %717 = vmatprep.subr.mxu0 0.0
        %718 = vmatpush1.msra.mxu0 0.0
        %719 = vmatprep.subr.mxu0 0.0
        %720 = vmatpush1.msra.mxu0 0.0
        %721 = vmatprep.subr.mxu0 0.0
        %722 = vmatpush1.msra.mxu0 0.0
        %723 = vmatprep.subr.mxu0 0.0
        %724 = vmatpush1.msra.mxu0 0.0
        %725 = vmatprep.subr.mxu0 0.0
        %726 = vmatpush1.msra.mxu0 0.0
        %727 = vmatprep.mubr.f32.mxu0 0.0
        %728 = vmatmul.mubr.f32.gmra.mrb[0].mxu0 %v531
        %v729 = vpop.f32.mrb[0].mxu0
        %v730 = vadd.f32 %v655, %v729
        %v731 = vpop.f32.mrb[0].mxu0
        %732 = vmatprep.mubr.f32.mxu0 0.0
        %733 = vmatmul.mubr.f32.gmra.mrb[0].mxu0 %v532
        %v734 = vpop.f32.mrb[0].mxu0
        %v735 = vadd.f32 %v660, %v734
        %v736 = vpop.f32.mrb[0].mxu0
        %737 = vdwg.mxu0
        %v738 = vld [vmem:[#allocation8] sm:$0xff]
        %v739 = vld [vmem:[#allocation8 + $0x8] sm:$0xff]
        %v740 = vld [vmem:[#allocation8 + $0x10] sm:$0xff]
        %v741 = vld [vmem:[#allocation8 + $0x18] sm:$0xff]
        %v742 = vld [vmem:[#allocation8 + $0x20] sm:$0xff]
        %v743 = vld [vmem:[#allocation8 + $0x28] sm:$0xff]
        %v744 = vld [vmem:[#allocation8 + $0x30] sm:$0xff]
        %v745 = vld [vmem:[#allocation8 + $0x38] sm:$0xff]
        %v746 = vld [vmem:[%s6] sm:$0x1]
        %v748 = vlaneseq
        %v749 = vshrl.u32 %v748, 7
        %v750 = vsub.s32 0, %v749
        %v751 = vrot.slane %v746, %v750
        %v753 = vsel %vm404, %v341, 0
        %v755 = vsel %vm404, %v342, 0
        %757 = vmatprep.subr.mxu0 0.0
        %758 = vmatpush1.msra.mxu0 %v738
        %759 = vmatprep.subr.mxu0 0.0
        %760 = vmatpush1.msra.mxu0 %v739
        %761 = vmatprep.subr.mxu0 0.0
        %762 = vmatpush1.msra.mxu0 %v740
        %763 = vmatprep.subr.mxu0 0.0
        %764 = vmatpush1.msra.mxu0 %v741
        %765 = vmatprep.subr.mxu0 0.0
        %766 = vmatpush1.msra.mxu0 %v742
        %767 = vmatprep.subr.mxu0 0.0
        %768 = vmatpush1.msra.mxu0 %v743
        %769 = vmatprep.subr.mxu0 0.0
        %770 = vmatpush1.msra.mxu0 %v744
        %771 = vmatprep.subr.mxu0 0.0
        %772 = vmatpush1.msra.mxu0 %v745
        %773 = vmatprep.subr.mxu0 0.0
        %774 = vmatpush1.msra.mxu0 0.0
        %775 = vmatprep.subr.mxu0 0.0
        %776 = vmatpush1.msra.mxu0 0.0
        %777 = vmatprep.subr.mxu0 0.0
        %778 = vmatpush1.msra.mxu0 0.0
        %779 = vmatprep.subr.mxu0 0.0
        %780 = vmatpush1.msra.mxu0 0.0
        %781 = vmatprep.subr.mxu0 0.0
        %782 = vmatpush1.msra.mxu0 0.0
        %783 = vmatprep.subr.mxu0 0.0
        %784 = vmatpush1.msra.mxu0 0.0
        %785 = vmatprep.subr.mxu0 0.0
        %786 = vmatpush1.msra.mxu0 0.0
        %787 = vmatprep.subr.mxu0 0.0
        %788 = vmatpush1.msra.mxu0 0.0
        %789 = vmatprep.subr.mxu0 0.0
        %790 = vmatpush1.msra.mxu0 0.0
        %791 = vmatprep.subr.mxu0 0.0
        %792 = vmatpush1.msra.mxu0 0.0
        %793 = vmatprep.subr.mxu0 0.0
        %794 = vmatpush1.msra.mxu0 0.0
        %795 = vmatprep.subr.mxu0 0.0
        %796 = vmatpush1.msra.mxu0 0.0
        %797 = vmatprep.subr.mxu0 0.0
        %798 = vmatpush1.msra.mxu0 0.0
        %799 = vmatprep.subr.mxu0 0.0
        %800 = vmatpush1.msra.mxu0 0.0
        %801 = vmatprep.subr.mxu0 0.0
        %802 = vmatpush1.msra.mxu0 0.0
        %803 = vmatprep.subr.mxu0 0.0
        %804 = vmatpush1.msra.mxu0 0.0
        %805 = vmatprep.subr.mxu0 0.0
        %806 = vmatpush1.msra.mxu0 0.0
        %807 = vmatprep.subr.mxu0 0.0
        %808 = vmatpush1.msra.mxu0 0.0
        %809 = vmatprep.subr.mxu0 0.0
        %810 = vmatpush1.msra.mxu0 0.0
        %811 = vmatprep.subr.mxu0 0.0
        %812 = vmatpush1.msra.mxu0 0.0
        %813 = vmatprep.subr.mxu0 0.0
        %814 = vmatpush1.msra.mxu0 0.0
        %815 = vmatprep.subr.mxu0 0.0
        %816 = vmatpush1.msra.mxu0 0.0
        %817 = vmatprep.subr.mxu0 0.0
        %818 = vmatpush1.msra.mxu0 0.0
        %819 = vmatprep.subr.mxu0 0.0
        %820 = vmatpush1.msra.mxu0 0.0
        %821 = vmatprep.mubr.f32.mxu0 0.0
        %822 = vmatmul.mubr.f32.gmra.mrb[0].mxu0 %v753
        %v823 = vpop.f32.mrb[0].mxu0
        %v824 = vadd.f32 %v751, %v823
        %v825 = vpop.f32.mrb[0].mxu0
        %826 = vmatprep.mubr.f32.mxu0 0.0
        %827 = vmatmul.mubr.f32.gmra.mrb[0].mxu0 %v755
        %v828 = vpop.f32.mrb[0].mxu0
        %v829 = vadd.f32 %v751, %v828
        %v830 = vpop.f32.mrb[0].mxu0
        %831 = vdwg.mxu0
        %v832 = vadd.f32 %v730, %v824
        %v833 = vadd.f32 %v735, %v829
        %v834 = vmax.f32 %v832, 0.0
        %v835 = vmax.f32 %v833, 0.0
        %836 = vst [vmem:[%s340] sm:$0xff] %v834
        %837 = vst [vmem:[%s340 + $0x8] sm:$0xff] %v835
        %s838 = sand.u32 %s186, 1
        %s839 = scalar_lea.sflag [#allocation4], %s838
        %s840 = sand.u32 %s186, 1
        %s841 = smul.addr %s840, 16
        %s842 = scalar_lea.vmem [#allocation10], %s841
        // Predicated region
        $region65: #{tpu_custom_call.1} parent=47 // pred_check
          %p843 = pneg %p196
        $region66: #{tpu_custom_call.1} parent=47 // pred_check_branch
          %845 = sbr.rel (%p843) target = $region68
        $region67: #{tpu_custom_call.1} parent=47 // pred_region
          %s847 = ssub.s32 256, 256
          %848 = vsyncadd %s839, %s847
          %s849 = smul.addr %s26, 2
          %s850 = smul.addr %s849, 128
          %s851 = scalar_lea.hbm %s7, %s850
          %s852 = sshll.u32 %s842, 4
          %s853 = int_to_ptr.vmem [resolvable:$true] %s852
          %858 = dma.vmem_to_hbm [thread:$0]  %s853, 256, %s851, %s839, 128, 128, 8
        $region68: #{tpu_custom_call.1} parent=47 // pred_fallthru
          _
      $region48: #{tpu_custom_call.1} parent=5 // pred_fallthru
        _
      %p859 = scmp.le.s32.totalorder 2, %s21
      // Predicated region
      $region69: #{tpu_custom_call.1} parent=5 // pred_check
        %p860 = pneg %p859
      $region70: #{tpu_custom_call.1} parent=5 // pred_check_branch
        %862 = sbr.rel (%p860) target = $region72
      $region71: #{tpu_custom_call.1} parent=5 // pred_region
        %s863 = ssub.s32 %s21, 2
        // Predicated region
        $region73: #{tpu_custom_call.1} parent=71 // pred_check
          %p864 = pneg %p202
        $region74: #{tpu_custom_call.1} parent=71 // pred_check_branch
          %866 = sbr.rel (%p864) target = $region76
        $region75: #{tpu_custom_call.1} parent=71 // pred_region
          %s867 = sand.u32 %s187, 1
          %s868 = scalar_lea.sflag [#allocation4], %s867
          %s869 = sand.u32 %s187, 1
          %s870 = smul.addr %s869, 16
          %s871 = scalar_lea.vmem [#allocation10], %s870
          %872 = dma.done %s868, 256
        $region76: #{tpu_custom_call.1} parent=71 // pred_fallthru
          _
      $region72: #{tpu_custom_call.1} parent=5 // pred_fallthru
        _
    $region6: #{tpu_custom_call.1} parent=1 // loop_footer
      %s25 = sadd.s32 1, %s21
    $region7: #{tpu_custom_call.1} parent=1 // loop_footer_branch
      %20 = sbr.rel target = $region3
    $region8: #{tpu_custom_call.1} parent=1 // loop_exit
      _
    %873 = vsyncpa [#allocation3], 1
    %s874 = scalar_lea.sflag [#allocation3], 1
    %875 = vsyncpa %s874, 1
    %876 = vsyncpa [#allocation6], 1
    %877 = vsyncpa [#allocation9], 1
    %878 = vsyncpa [#allocation4], 1
    %s879 = scalar_lea.sflag [#allocation4], 1
    %880 = vsyncpa %s879, 1

</llo_original>
